<compile_context>
chip_gen: v6e
topology: v6e:2x2x1
jax: 0.10.0
libtpu: 0.0.40
codegen_flags: <defaults>
</compile_context>

<pallas_src>
import jax
import jax.numpy as jnp
from jax.experimental import pallas as pl
from jax.experimental.pallas import tpu as pltpu


def _encoder_gru_kernel(tok_ref, emb_ref, h0_ref, wih_ref, whh_ref,
                        bih_ref, bhh_ref, out_ref, hn_ref):
    """One grid step = one token through the whole L-layer GRU stack.

    tok_ref : SMEM (T,) int32        token ids (scalar prefetch; used in index_maps)
    emb_ref : VMEM (1, 1, H)         embedding row of the current token
    h0_ref  : VMEM (L, 1, H)         initial hidden state (read at t == 0 only)
    wih_ref : VMEM (L, H, WP)        W_ih^T, gates (r|z|n) at lanes 0/H/2H, zero-padded
    whh_ref : VMEM (L, H, WP)        W_hh^T, same layout
    bih_ref : VMEM (L, 1, WP)        b_ih, zero-padded
    bhh_ref : VMEM (L, 1, WP)        b_hh, zero-padded
    out_ref : VMEM (1, 1, H)         per-token output (last layer's hidden)
    hn_ref  : VMEM (L, 1, H)         carried hidden state (resident accumulator block)
    """
    del tok_ref  # only consumed by the index_maps
    L, _, H = hn_ref.shape

    @pl.when(pl.program_id(0) == 0)
    def _():
        hn_ref[...] = h0_ref[...]

    # Embedding row was gathered by the index_map (scalar-prefetched token id).
    # TODO(synk): nn.Dropout only implemented for eval mode (identity).
    x = emb_ref[0]                                           # (1, H)

    for l in range(L):                                       # L tiny & static -> unroll
        h = hn_ref[l]                                        # (1, H), resident in VMEM
        gi = jnp.dot(x, wih_ref[l],
                     preferred_element_type=jnp.float32) + bih_ref[l]   # (1, WP)
        gh = jnp.dot(h, whh_ref[l],
                     preferred_element_type=jnp.float32) + bhh_ref[l]   # (1, WP)
        r = jax.nn.sigmoid(gi[:, 0:H] + gh[:, 0:H])
        z = jax.nn.sigmoid(gi[:, H:2 * H] + gh[:, H:2 * H])
        n = jnp.tanh(gi[:, 2 * H:3 * H] + r * gh[:, 2 * H:3 * H])
        h_new = (1.0 - z) * n + z * h                        # (1, H)
        hn_ref[l] = h_new
        x = h_new                                            # feeds next layer

    out_ref[0] = x                                           # this token's output


def prepare_encoder_params(emb_table, w_ih, w_hh, b_ih, b_hh):
    """Re-layout PyTorch-native GRU params for the kernel (one-time per model).

    emb_table : (V, H)        nn.Embedding weight
    w_ih,w_hh : (L, 3H, H)    weight_ih_l{k} / weight_hh_l{k}, gate order (r,z,n)
    b_ih,b_hh : (L, 3H)       bias_ih_l{k} / bias_hh_l{k}
    """
    V, H = emb_table.shape
    L = w_ih.shape[0]
    WP = 128 * ((3 * H + 127) // 128)                        # pad gate lanes to 128

    emb_p = emb_table.reshape(V, 1, H).astype(jnp.float32)

    def pack_w(w):                                           # (L,3H,H) -> (L,H,WP)
        wt = jnp.transpose(w, (0, 2, 1)).astype(jnp.float32)
        return jnp.pad(wt, ((0, 0), (0, 0), (0, WP - 3 * H)))

    def pack_b(b):                                           # (L,3H) -> (L,1,WP)
        return jnp.pad(b.reshape(L, 1, 3 * H).astype(jnp.float32),
                       ((0, 0), (0, 0), (0, WP - 3 * H)))

    return emb_p, pack_w(w_ih), pack_w(w_hh), pack_b(b_ih), pack_b(b_hh)


@jax.jit
def encode_sequence(tokens, h0, emb_p, wih_p, whh_p, bih_p, bhh_p):
    """Run T tokens through the GRU stack in a single pallas_call.

    tokens : (T,) int32, h0 : (L, 1, H)
    returns: outputs (T, 1, H), hidden_n (L, 1, H)
    """
    T = tokens.shape[0]
    V = emb_p.shape[0]
    L, _, H = h0.shape
    WP = wih_p.shape[-1]

    tok = jnp.clip(tokens.astype(jnp.int32), 0, V - 1)       # no silent OOB reads

    grid_spec = pltpu.PrefetchScalarGridSpec(
        num_scalar_prefetch=1,                                # token ids -> SMEM
        grid=(T,),
        in_specs=[
            pl.BlockSpec((1, 1, H), lambda t, tok: (tok[t], 0, 0)),   # emb row only
            pl.BlockSpec((L, 1, H), lambda t, tok: (0, 0, 0)),        # h0
            pl.BlockSpec((L, H, WP), lambda t, tok: (0, 0, 0)),       # W_ih^T (resident)
            pl.BlockSpec((L, H, WP), lambda t, tok: (0, 0, 0)),       # W_hh^T (resident)
            pl.BlockSpec((L, 1, WP), lambda t, tok: (0, 0, 0)),       # b_ih
            pl.BlockSpec((L, 1, WP), lambda t, tok: (0, 0, 0)),       # b_hh
        ],
        out_specs=[
            pl.BlockSpec((1, 1, H), lambda t, tok: (t, 0, 0)),        # per-token output
            pl.BlockSpec((L, 1, H), lambda t, tok: (0, 0, 0)),        # h_n (carried)
        ],
    )

    out, h_n = pl.pallas_call(
        _encoder_gru_kernel,
        grid_spec=grid_spec,
        out_shape=(jax.ShapeDtypeStruct((T, 1, H), jnp.float32),
                   jax.ShapeDtypeStruct((L, 1, H), jnp.float32)),
        compiler_params=pltpu.CompilerParams(
            dimension_semantics=("arbitrary",)),              # recurrent -> sequential
    )(tok, emb_p, h0, wih_p, whh_p, bih_p, bhh_p)
    return out, h_n


def encoder_rnn_forward(token, hidden, params):
    """Matches PyTorch EncoderRNN.forward (model_variant='gru', eval mode).

    token : scalar int32 (the `features` tensor), hidden : (L, 1, H)
    returns (output (1, 1, H), hidden (L, 1, H))
    """
    out, h_n = encode_sequence(jnp.reshape(jnp.asarray(token, jnp.int32), (1,)),
                               hidden, *params)
    return out, h_n


def gru_reference(tokens, emb_table, h0, w_ih, w_hh, b_ih, b_hh):
    """Pure-JAX reference with PyTorch GRU semantics (eval mode)."""
    L, _, H = h0.shape
    h = [h0[l, 0] for l in range(L)]
    outs = []
    for tok in tokens:
        x = emb_table[tok]
        for l in range(L):
            gi = w_ih[l] @ x + b_ih[l]
            gh = w_hh[l] @ h[l] + b_hh[l]
            r = jax.nn.sigmoid(gi[:H] + gh[:H])
            z = jax.nn.sigmoid(gi[H:2 * H] + gh[H:2 * H])
            n = jnp.tanh(gi[2 * H:] + r * gh[2 * H:])
            h[l] = (1.0 - z) * n + z * h[l]
            x = h[l]
        outs.append(x)
    return (jnp.stack(outs).reshape(len(tokens), 1, H),
            jnp.stack(h).reshape(L, 1, H))


if __name__ == "__main__":
    # Module hyperparameters (model_variant='gru'); dropout_p only matters in
    # training mode -> eval mode is an identity and is what the kernel implements.
    INPUT_SIZE = 16      # vocab size for nn.Embedding
    HIDDEN = 32
    NUM_LAYERS = 2
    SEQ_LEN = 8

    key = jax.random.PRNGKey(0)
    k_emb, k_wih, k_whh, k_bih, k_bhh, k_tok = jax.random.split(key, 6)
    bound = 1.0 / jnp.sqrt(HIDDEN)

    emb_table = jax.random.normal(k_emb, (INPUT_SIZE, HIDDEN), jnp.float32)
    # PyTorch-native layouts: weight_*_l{k} is (3H, H), gate order (r, z, n).
    w_ih = jax.random.uniform(k_wih, (NUM_LAYERS, 3 * HIDDEN, HIDDEN),
                              jnp.float32, -bound, bound)
    w_hh = jax.random.uniform(k_whh, (NUM_LAYERS, 3 * HIDDEN, HIDDEN),
                              jnp.float32, -bound, bound)
    b_ih = jax.random.uniform(k_bih, (NUM_LAYERS, 3 * HIDDEN),
                              jnp.float32, -bound, bound)
    b_hh = jax.random.uniform(k_bhh, (NUM_LAYERS, 3 * HIDDEN),
                              jnp.float32, -bound, bound)

    params = prepare_encoder_params(emb_table, w_ih, w_hh, b_ih, b_hh)

    h0 = jnp.zeros((NUM_LAYERS, 1, HIDDEN), jnp.float32)     # init_hidden()

    # --- single-token forward (exact PyTorch forward semantics) ---------------
    token = jnp.int32(3)
    out1, hn1 = encoder_rnn_forward(token, h0, params)
    out1 = jax.block_until_ready(out1)
    hn1 = jax.block_until_ready(hn1)
    ref_out1, ref_hn1 = gru_reference(jnp.array([3], jnp.int32), emb_table, h0,
                                      w_ih, w_hh, b_ih, b_hh)
    assert out1.shape == (1, 1, HIDDEN) and hn1.shape == (NUM_LAYERS, 1, HIDDEN)
    assert jnp.allclose(out1, ref_out1, rtol=1e-3, atol=1e-3)
    assert jnp.allclose(hn1, ref_hn1, rtol=1e-3, atol=1e-3)

    # --- whole sequence in one kernel call (amortized launch + weight DMA) ----
    tokens = jax.random.randint(k_tok, (SEQ_LEN,), 0, INPUT_SIZE, jnp.int32)
    outs, hns = encode_sequence(tokens, h0, *params)
    outs = jax.block_until_ready(outs)
    hns = jax.block_until_ready(hns)
    ref_outs, ref_hns = gru_reference(tokens, emb_table, h0,
                                      w_ih, w_hh, b_ih, b_hh)
    assert outs.shape == (SEQ_LEN, 1, HIDDEN)
    assert hns.shape == (NUM_LAYERS, 1, HIDDEN)
    assert jnp.allclose(outs, ref_outs, rtol=1e-3, atol=1e-3)
    assert jnp.allclose(hns, ref_hns, rtol=1e-3, atol=1e-3)

    print("KERNEL_OK")
</pallas_src>

<mosaic_0001>
module attributes {stable_mosaic.version = 11 : i64} {
  func.func @_encoder_gru_kernel(%arg0: i32, %arg1: memref<1xi32, #tpu.memory_space<smem>>, %arg2: memref<1x1x32xf32, #tpu.memory_space<vmem>>, %arg3: memref<2x1x32xf32, #tpu.memory_space<vmem>>, %arg4: memref<2x32x128xf32, #tpu.memory_space<vmem>>, %arg5: memref<2x32x128xf32, #tpu.memory_space<vmem>>, %arg6: memref<2x1x128xf32, #tpu.memory_space<vmem>>, %arg7: memref<2x1x128xf32, #tpu.memory_space<vmem>>, %arg8: memref<1x1x32xf32, #tpu.memory_space<vmem>>, %arg9: memref<2x1x32xf32, #tpu.memory_space<vmem>>) attributes {dimension_semantics = [#tpu.dimension_semantics<arbitrary>], iteration_bounds = array<i64: 1>, scalar_prefetch = 1 : i64, scratch_operands = 0 : i64, tpu.core_type = #tpu.core_type<tc>, window_params = [{transform_indices = @transform_0, window_bounds = array<i64: 1, 1, 32>}, {pipeline_mode = #tpu.pipeline_mode<synchronous>, transform_indices = @transform_1, window_bounds = array<i64: 2, 1, 32>}, {pipeline_mode = #tpu.pipeline_mode<synchronous>, transform_indices = @transform_2, window_bounds = array<i64: 2, 32, 128>}, {pipeline_mode = #tpu.pipeline_mode<synchronous>, transform_indices = @transform_3, window_bounds = array<i64: 2, 32, 128>}, {pipeline_mode = #tpu.pipeline_mode<synchronous>, transform_indices = @transform_4, window_bounds = array<i64: 2, 1, 128>}, {pipeline_mode = #tpu.pipeline_mode<synchronous>, transform_indices = @transform_5, window_bounds = array<i64: 2, 1, 128>}, {transform_indices = @transform_6, window_bounds = array<i64: 1, 1, 32>}, {pipeline_mode = #tpu.pipeline_mode<synchronous>, transform_indices = @transform_7, window_bounds = array<i64: 2, 1, 32>}]} {
    %c0_i32 = arith.constant 0 : i32
    %0 = arith.cmpi eq, %arg0, %c0_i32 : i32
    %1 = arith.extui %0 : i1 to i32
    %c0_i32_0 = arith.constant 0 : i32
    %2 = arith.cmpi ne, %1, %c0_i32_0 : i32
    scf.if %2 {
      %c0_50 = arith.constant 0 : index
      %c0_51 = arith.constant 0 : index
      %c0_52 = arith.constant 0 : index
      %94 = vector.load %arg3[%c0_50, %c0_51, %c0_52] : memref<2x1x32xf32, #tpu.memory_space<vmem>>, vector<2x1x32xf32>
      %c0_53 = arith.constant 0 : index
      %c0_54 = arith.constant 0 : index
      %c0_55 = arith.constant 0 : index
      %95 = vector.load %arg9[%c0_53, %c0_54, %c0_55] : memref<2x1x32xf32, #tpu.memory_space<vmem>>, vector<2x1x32xf32>
      tpu.vector_store %arg9[%c0_53, %c0_54, %c0_55], %94 {strides = array<i32>} : memref<2x1x32xf32, #tpu.memory_space<vmem>>, vector<2x1x32xf32>,
    } else {
    }
    %c0 = arith.constant 0 : index
    %c0_1 = arith.constant 0 : index
    %c0_2 = arith.constant 0 : index
    %3 = vector.load %arg2[%c0, %c0_1, %c0_2] : memref<1x1x32xf32, #tpu.memory_space<vmem>>, vector<1x1x32xf32>
    %4 = vector.shape_cast %3 : vector<1x1x32xf32> to vector<1x32xf32>
    %c0_3 = arith.constant 0 : index
    %c0_4 = arith.constant 0 : index
    %c0_5 = arith.constant 0 : index
    %5 = vector.load %arg9[%c0_3, %c0_4, %c0_5] : memref<2x1x32xf32, #tpu.memory_space<vmem>>, vector<1x1x32xf32>
    %6 = vector.shape_cast %5 : vector<1x1x32xf32> to vector<1x32xf32>
    %c0_6 = arith.constant 0 : index
    %c0_7 = arith.constant 0 : index
    %c0_8 = arith.constant 0 : index
    %7 = vector.load %arg4[%c0_6, %c0_7, %c0_8] : memref<2x32x128xf32, #tpu.memory_space<vmem>>, vector<1x32x128xf32>
    %8 = vector.shape_cast %7 : vector<1x32x128xf32> to vector<32x128xf32>
    %cst = arith.constant dense<0.000000e+00> : vector<1x128xf32>
    %9 = tpu.matmul %4, %8, %cst {dimension_numbers = #tpu.dot_dimension_numbers<[1], [0], [0], [1], [0, 0, 1, 1], [], []>} : vector<1x32xf32>, vector<32x128xf32>, vector<1x128xf32> -> vector<1x128xf32>
    %c0_9 = arith.constant 0 : index
    %c0_10 = arith.constant 0 : index
    %c0_11 = arith.constant 0 : index
    %10 = vector.load %arg6[%c0_9, %c0_10, %c0_11] : memref<2x1x128xf32, #tpu.memory_space<vmem>>, vector<1x1x128xf32>
    %11 = vector.shape_cast %10 : vector<1x1x128xf32> to vector<1x128xf32>
    %12 = arith.addf %9, %11 : vector<1x128xf32>
    %c0_12 = arith.constant 0 : index
    %c0_13 = arith.constant 0 : index
    %c0_14 = arith.constant 0 : index
    %13 = vector.load %arg5[%c0_12, %c0_13, %c0_14] : memref<2x32x128xf32, #tpu.memory_space<vmem>>, vector<1x32x128xf32>
    %14 = vector.shape_cast %13 : vector<1x32x128xf32> to vector<32x128xf32>
    %cst_15 = arith.constant dense<0.000000e+00> : vector<1x128xf32>
    %15 = tpu.matmul %6, %14, %cst_15 {dimension_numbers = #tpu.dot_dimension_numbers<[1], [0], [0], [1], [0, 0, 1, 1], [], []>} : vector<1x32xf32>, vector<32x128xf32>, vector<1x128xf32> -> vector<1x128xf32>
    %c0_16 = arith.constant 0 : index
    %c0_17 = arith.constant 0 : index
    %c0_18 = arith.constant 0 : index
    %16 = vector.load %arg7[%c0_16, %c0_17, %c0_18] : memref<2x1x128xf32, #tpu.memory_space<vmem>>, vector<1x1x128xf32>
    %17 = vector.shape_cast %16 : vector<1x1x128xf32> to vector<1x128xf32>
    %18 = arith.addf %15, %17 : vector<1x128xf32>
    %19 = vector.extract_strided_slice %12 {offsets = [0, 0], sizes = [1, 32], strides = [1, 1]} : vector<1x128xf32> to vector<1x32xf32>
    %20 = vector.extract_strided_slice %18 {offsets = [0, 0], sizes = [1, 32], strides = [1, 1]} : vector<1x128xf32> to vector<1x32xf32>
    %21 = arith.addf %19, %20 : vector<1x32xf32>
    %22 = arith.negf %21 : vector<1x32xf32>
    %23 = math.exp %22 : vector<1x32xf32>
    %cst_19 = arith.constant 1.000000e+00 : f32
    %24 = vector.broadcast %cst_19 : f32 to vector<1x32xf32>
    %25 = arith.addf %24, %23 : vector<1x32xf32>
    %26 = arith.divf %24, %25 : vector<1x32xf32>
    %27 = vector.extract_strided_slice %12 {offsets = [0, 32], sizes = [1, 32], strides = [1, 1]} : vector<1x128xf32> to vector<1x32xf32>
    %28 = vector.extract_strided_slice %18 {offsets = [0, 32], sizes = [1, 32], strides = [1, 1]} : vector<1x128xf32> to vector<1x32xf32>
    %29 = arith.addf %27, %28 : vector<1x32xf32>
    %30 = arith.negf %29 : vector<1x32xf32>
    %31 = math.exp %30 : vector<1x32xf32>
    %cst_20 = arith.constant 1.000000e+00 : f32
    %32 = vector.broadcast %cst_20 : f32 to vector<1x32xf32>
    %33 = arith.addf %32, %31 : vector<1x32xf32>
    %34 = arith.divf %32, %33 : vector<1x32xf32>
    %35 = vector.extract_strided_slice %12 {offsets = [0, 64], sizes = [1, 32], strides = [1, 1]} : vector<1x128xf32> to vector<1x32xf32>
    %36 = vector.extract_strided_slice %18 {offsets = [0, 64], sizes = [1, 32], strides = [1, 1]} : vector<1x128xf32> to vector<1x32xf32>
    %37 = arith.mulf %26, %36 : vector<1x32xf32>
    %38 = arith.addf %35, %37 : vector<1x32xf32>
    %39 = math.tanh %38 : vector<1x32xf32>
    %cst_21 = arith.constant 1.000000e+00 : f32
    %40 = vector.broadcast %cst_21 : f32 to vector<1x32xf32>
    %41 = arith.subf %40, %34 : vector<1x32xf32>
    %42 = arith.mulf %41, %39 : vector<1x32xf32>
    %43 = arith.mulf %34, %6 : vector<1x32xf32>
    %44 = arith.addf %42, %43 : vector<1x32xf32>
    %c0_22 = arith.constant 0 : index
    %c0_23 = arith.constant 0 : index
    %c0_24 = arith.constant 0 : index
    %45 = vector.load %arg9[%c0_22, %c0_23, %c0_24] : memref<2x1x32xf32, #tpu.memory_space<vmem>>, vector<1x1x32xf32>
    %46 = vector.shape_cast %45 : vector<1x1x32xf32> to vector<1x32xf32>
    %47 = vector.shape_cast %44 : vector<1x32xf32> to vector<1x1x32xf32>
    tpu.vector_store %arg9[%c0_22, %c0_23, %c0_24], %47 {strides = array<i32>} : memref<2x1x32xf32, #tpu.memory_space<vmem>>, vector<1x1x32xf32>,
    %c1 = arith.constant 1 : index
    %c0_25 = arith.constant 0 : index
    %c0_26 = arith.constant 0 : index
    %48 = vector.load %arg9[%c1, %c0_25, %c0_26] : memref<2x1x32xf32, #tpu.memory_space<vmem>>, vector<1x1x32xf32>
    %49 = vector.shape_cast %48 : vector<1x1x32xf32> to vector<1x32xf32>
    %c1_27 = arith.constant 1 : index
    %c0_28 = arith.constant 0 : index
    %c0_29 = arith.constant 0 : index
    %50 = vector.load %arg4[%c1_27, %c0_28, %c0_29] : memref<2x32x128xf32, #tpu.memory_space<vmem>>, vector<1x32x128xf32>
    %51 = vector.shape_cast %50 : vector<1x32x128xf32> to vector<32x128xf32>
    %cst_30 = arith.constant dense<0.000000e+00> : vector<1x128xf32>
    %52 = tpu.matmul %44, %51, %cst_30 {dimension_numbers = #tpu.dot_dimension_numbers<[1], [0], [0], [1], [0, 0, 1, 1], [], []>} : vector<1x32xf32>, vector<32x128xf32>, vector<1x128xf32> -> vector<1x128xf32>
    %c1_31 = arith.constant 1 : index
    %c0_32 = arith.constant 0 : index
    %c0_33 = arith.constant 0 : index
    %53 = vector.load %arg6[%c1_31, %c0_32, %c0_33] : memref<2x1x128xf32, #tpu.memory_space<vmem>>, vector<1x1x128xf32>
    %54 = vector.shape_cast %53 : vector<1x1x128xf32> to vector<1x128xf32>
    %55 = arith.addf %52, %54 : vector<1x128xf32>
    %c1_34 = arith.constant 1 : index
    %c0_35 = arith.constant 0 : index
    %c0_36 = arith.constant 0 : index
    %56 = vector.load %arg5[%c1_34, %c0_35, %c0_36] : memref<2x32x128xf32, #tpu.memory_space<vmem>>, vector<1x32x128xf32>
    %57 = vector.shape_cast %56 : vector<1x32x128xf32> to vector<32x128xf32>
    %cst_37 = arith.constant dense<0.000000e+00> : vector<1x128xf32>
    %58 = tpu.matmul %49, %57, %cst_37 {dimension_numbers = #tpu.dot_dimension_numbers<[1], [0], [0], [1], [0, 0, 1, 1], [], []>} : vector<1x32xf32>, vector<32x128xf32>, vector<1x128xf32> -> vector<1x128xf32>
    %c1_38 = arith.constant 1 : index
    %c0_39 = arith.constant 0 : index
    %c0_40 = arith.constant 0 : index
    %59 = vector.load %arg7[%c1_38, %c0_39, %c0_40] : memref<2x1x128xf32, #tpu.memory_space<vmem>>, vector<1x1x128xf32>
    %60 = vector.shape_cast %59 : vector<1x1x128xf32> to vector<1x128xf32>
    %61 = arith.addf %58, %60 : vector<1x128xf32>
    %62 = vector.extract_strided_slice %55 {offsets = [0, 0], sizes = [1, 32], strides = [1, 1]} : vector<1x128xf32> to vector<1x32xf32>
    %63 = vector.extract_strided_slice %61 {offsets = [0, 0], sizes = [1, 32], strides = [1, 1]} : vector<1x128xf32> to vector<1x32xf32>
    %64 = arith.addf %62, %63 : vector<1x32xf32>
    %65 = arith.negf %64 : vector<1x32xf32>
    %66 = math.exp %65 : vector<1x32xf32>
    %cst_41 = arith.constant 1.000000e+00 : f32
    %67 = vector.broadcast %cst_41 : f32 to vector<1x32xf32>
    %68 = arith.addf %67, %66 : vector<1x32xf32>
    %69 = arith.divf %67, %68 : vector<1x32xf32>
    %70 = vector.extract_strided_slice %55 {offsets = [0, 32], sizes = [1, 32], strides = [1, 1]} : vector<1x128xf32> to vector<1x32xf32>
    %71 = vector.extract_strided_slice %61 {offsets = [0, 32], sizes = [1, 32], strides = [1, 1]} : vector<1x128xf32> to vector<1x32xf32>
    %72 = arith.addf %70, %71 : vector<1x32xf32>
    %73 = arith.negf %72 : vector<1x32xf32>
    %74 = math.exp %73 : vector<1x32xf32>
    %cst_42 = arith.constant 1.000000e+00 : f32
    %75 = vector.broadcast %cst_42 : f32 to vector<1x32xf32>
    %76 = arith.addf %75, %74 : vector<1x32xf32>
    %77 = arith.divf %75, %76 : vector<1x32xf32>
    %78 = vector.extract_strided_slice %55 {offsets = [0, 64], sizes = [1, 32], strides = [1, 1]} : vector<1x128xf32> to vector<1x32xf32>
    %79 = vector.extract_strided_slice %61 {offsets = [0, 64], sizes = [1, 32], strides = [1, 1]} : vector<1x128xf32> to vector<1x32xf32>
    %80 = arith.mulf %69, %79 : vector<1x32xf32>
    %81 = arith.addf %78, %80 : vector<1x32xf32>
    %82 = math.tanh %81 : vector<1x32xf32>
    %cst_43 = arith.constant 1.000000e+00 : f32
    %83 = vector.broadcast %cst_43 : f32 to vector<1x32xf32>
    %84 = arith.subf %83, %77 : vector<1x32xf32>
    %85 = arith.mulf %84, %82 : vector<1x32xf32>
    %86 = arith.mulf %77, %49 : vector<1x32xf32>
    %87 = arith.addf %85, %86 : vector<1x32xf32>
    %c1_44 = arith.constant 1 : index
    %c0_45 = arith.constant 0 : index
    %c0_46 = arith.constant 0 : index
    %88 = vector.load %arg9[%c1_44, %c0_45, %c0_46] : memref<2x1x32xf32, #tpu.memory_space<vmem>>, vector<1x1x32xf32>
    %89 = vector.shape_cast %88 : vector<1x1x32xf32> to vector<1x32xf32>
    %90 = vector.shape_cast %87 : vector<1x32xf32> to vector<1x1x32xf32>
    tpu.vector_store %arg9[%c1_44, %c0_45, %c0_46], %90 {strides = array<i32>} : memref<2x1x32xf32, #tpu.memory_space<vmem>>, vector<1x1x32xf32>,
    %c0_47 = arith.constant 0 : index
    %c0_48 = arith.constant 0 : index
    %c0_49 = arith.constant 0 : index
    %91 = vector.load %arg8[%c0_47, %c0_48, %c0_49] : memref<1x1x32xf32, #tpu.memory_space<vmem>>, vector<1x1x32xf32>
    %92 = vector.shape_cast %91 : vector<1x1x32xf32> to vector<1x32xf32>
    %93 = vector.shape_cast %87 : vector<1x32xf32> to vector<1x1x32xf32>
    tpu.vector_store %arg8[%c0_47, %c0_48, %c0_49], %93 {strides = array<i32>} : memref<1x1x32xf32, #tpu.memory_space<vmem>>, vector<1x1x32xf32>,
    return
  }
  func.func @transform_0(%arg0: i32, %arg1: memref<1xi32, #tpu.memory_space<smem>>) -> (i32, i32, i32) {
    %0 = arith.index_cast %arg0 : i32 to index
    %1 = memref.load %arg1[%0] : memref<1xi32, #tpu.memory_space<smem>>
    %c0_i32 = arith.constant 0 : i32
    %c0_i32_0 = arith.constant 0 : i32
    %c0_i32_1 = arith.constant 0 : i32
    return %1, %c0_i32, %c0_i32_0 : i32, i32, i32
  }
  func.func @transform_1(%arg0: i32, %arg1: memref<1xi32, #tpu.memory_space<smem>>) -> (i32, i32, i32) {
    %c0_i32 = arith.constant 0 : i32
    %c0_i32_0 = arith.constant 0 : i32
    %c0_i32_1 = arith.constant 0 : i32
    %c0_i32_2 = arith.constant 0 : i32
    return %c0_i32, %c0_i32_0, %c0_i32_1 : i32, i32, i32
  }
  func.func @transform_2(%arg0: i32, %arg1: memref<1xi32, #tpu.memory_space<smem>>) -> (i32, i32, i32) {
    %c0_i32 = arith.constant 0 : i32
    %c0_i32_0 = arith.constant 0 : i32
    %c0_i32_1 = arith.constant 0 : i32
    %c0_i32_2 = arith.constant 0 : i32
    return %c0_i32, %c0_i32_0, %c0_i32_1 : i32, i32, i32
  }
  func.func @transform_3(%arg0: i32, %arg1: memref<1xi32, #tpu.memory_space<smem>>) -> (i32, i32, i32) {
    %c0_i32 = arith.constant 0 : i32
    %c0_i32_0 = arith.constant 0 : i32
    %c0_i32_1 = arith.constant 0 : i32
    %c0_i32_2 = arith.constant 0 : i32
    return %c0_i32, %c0_i32_0, %c0_i32_1 : i32, i32, i32
  }
  func.func @transform_4(%arg0: i32, %arg1: memref<1xi32, #tpu.memory_space<smem>>) -> (i32, i32, i32) {
    %c0_i32 = arith.constant 0 : i32
    %c0_i32_0 = arith.constant 0 : i32
    %c0_i32_1 = arith.constant 0 : i32
    %c0_i32_2 = arith.constant 0 : i32
    return %c0_i32, %c0_i32_0, %c0_i32_1 : i32, i32, i32
  }
  func.func @transform_5(%arg0: i32, %arg1: memref<1xi32, #tpu.memory_space<smem>>) -> (i32, i32, i32) {
    %c0_i32 = arith.constant 0 : i32
    %c0_i32_0 = arith.constant 0 : i32
    %c0_i32_1 = arith.constant 0 : i32
    %c0_i32_2 = arith.constant 0 : i32
    return %c0_i32, %c0_i32_0, %c0_i32_1 : i32, i32, i32
  }
  func.func @transform_6(%arg0: i32, %arg1: memref<1xi32, #tpu.memory_space<smem>>) -> (i32, i32, i32) {
    %c0_i32 = arith.constant 0 : i32
    %c0_i32_0 = arith.constant 0 : i32
    %c0_i32_1 = arith.constant 0 : i32
    return %arg0, %c0_i32, %c0_i32_0 : i32, i32, i32
  }
  func.func @transform_7(%arg0: i32, %arg1: memref<1xi32, #tpu.memory_space<smem>>) -> (i32, i32, i32) {
    %c0_i32 = arith.constant 0 : i32
    %c0_i32_0 = arith.constant 0 : i32
    %c0_i32_1 = arith.constant 0 : i32
    %c0_i32_2 = arith.constant 0 : i32
    return %c0_i32, %c0_i32_0, %c0_i32_1 : i32, i32, i32
  }
}

</mosaic_0001>

<llo_original>
// kernel: encode_sequence.1
$region0: #{encode_sequence.1}
  #allocation0 [shape = 'u32[]', space=smem, size = 0x4, offset = 0x4, fixed_abs, tag = 'smem constant byte address 0x4 - core index']
  #allocation1 [shape = 'u32[144,128]{1,0:T(1,128)}', space=vmem, size = 0x12000, scoped, tag = 'internal scratch']
  #allocation2 [shape = 's32[1]{0}', space=sflag, size = 0x4, scoped, tag = 'scoped memory for encode_sequence.1']
  #allocation3 [shape = 's32[1]{0:T(128)S(6)}', space=smem, size = 0x200, scoped, tag = 'prefetched SMEM operand 0']
  %s0 = inlined_call_operand.<no memory space> [shape: s32[1], index: 0, kind: input, shape index: {}]
  %s1 = inlined_call_operand.hbm [shape: f32[16,1,32], index: 1, kind: input, shape index: {}]
  %s2 = inlined_call_operand.vmem [shape: f32[2,1,32], index: 2, kind: input, shape index: {}]
  %s3 = inlined_call_operand.hbm [shape: f32[2,32,128], index: 3, kind: input, shape index: {}]
  %s4 = inlined_call_operand.hbm [shape: f32[2,32,128], index: 4, kind: input, shape index: {}]
  %s5 = inlined_call_operand.vmem [shape: f32[2,1,128], index: 5, kind: input, shape index: {}]
  %s6 = inlined_call_operand.vmem [shape: f32[2,1,128], index: 6, kind: input, shape index: {}]
  %s7 = inlined_call_operand.hbm [shape: f32[1,1,32], index: 7, kind: output, shape index: {0}]
  %s8 = inlined_call_operand.hbm [shape: f32[2,1,32], index: 8, kind: output, shape index: {1}]
  %9 = xla_tuple %s7, %s8
  %s10 = sld [smem:[#allocation0]]
  $region58: #{encode_sequence.1} parent=0
    _
  %s12 = ssub.s32 1, %s10
  %s13 = scalar_select 0, %s12, %s10
  %14 = sst [smem:[#allocation3]] %s0
  $region1: #{encode_sequence.1} parent=0
    #allocation4 [shape = 'u8[512]{0}', space=vmem, size = 0x400, scoped, tag = 'input window, operand 1, single buffered']
    #allocation5 [shape = 's32[1]{0}', space=sflag, size = 0x4, scoped, tag = 'scoped memory for encode_sequence.1']
    #allocation6 [shape = 's32[1]{0}', space=sflag, size = 0x4, scoped, tag = 'scoped memory for encode_sequence.1']
    #allocation7 [shape = 'u8[32768]{0}', space=vmem, size = 0x8000, scoped, tag = 'input window, operand 3, single buffered']
    #allocation8 [shape = 's32[1]{0}', space=sflag, size = 0x4, scoped, tag = 'scoped memory for encode_sequence.1']
    #allocation9 [shape = 'u8[32768]{0}', space=vmem, size = 0x8000, scoped, tag = 'input window, operand 4, single buffered']
    #allocation10 [shape = 'u8[512]{0}', space=vmem, size = 0x400, scoped, tag = 'output window, operand 0, single buffered']
    #allocation11 [shape = 'u8[1024]{0}', space=vmem, size = 0x400, scoped, tag = 'output window, operand 1, single buffered']
    #allocation12 [shape = 's32[1]{0}', space=sflag, size = 0x4, scoped, tag = 'scoped memory for encode_sequence.1']
    %15 = vsyncpa [#allocation5], 0
    %16 = vsyncpa [#allocation8], 0
    %17 = vsyncpa [#allocation6], 0
    %18 = vsyncpa [#allocation12], 0
    // Predicated region
    $region2: #{encode_sequence.1} parent=1 // pred_check
      _
    $region3: #{encode_sequence.1} parent=1 // pred_check_branch
      %20 = sbr.rel (0) target = $region5
    $region4: #{encode_sequence.1} parent=1 // pred_region
      %s21 = sld [smem:[#allocation3]]
      %s23 = ssub.s32 16, 16
      %24 = vsyncadd [#allocation5], %s23
      %s25 = smul.addr %s21, 16
      %s26 = scalar_lea.hbm %s1, %s25
      %s28 = sshll.u32 [#allocation4], 4
      %s29 = int_to_ptr.vmem [resolvable:$true] %s28
      %31 = dma.hbm_to_vmem [thread:$0]  %s26, 16, %s29, [#allocation5]
    $region5: #{encode_sequence.1} parent=1 // pred_fallthru
      _
    // Predicated region
    $region6: #{encode_sequence.1} parent=1 // pred_check
      _
    $region7: #{encode_sequence.1} parent=1 // pred_check_branch
      %33 = sbr.rel (0) target = $region9
    $region8: #{encode_sequence.1} parent=1 // pred_region
      _
    $region9: #{encode_sequence.1} parent=1 // pred_fallthru
      _
    // Predicated region
    $region10: #{encode_sequence.1} parent=1 // pred_check
      _
    $region11: #{encode_sequence.1} parent=1 // pred_check_branch
      %35 = sbr.rel (0) target = $region13
    $region12: #{encode_sequence.1} parent=1 // pred_region
      %s37 = ssub.s32 1024, 1024
      %38 = vsyncadd [#allocation8], %s37
      %s39 = sshll.u32 [#allocation7], 4
      %s40 = int_to_ptr.vmem [resolvable:$true] %s39
      %45 = dma.hbm_to_vmem [thread:$0]  %s3, 1024, %s40, [#allocation8], 128, 128, 8
    $region13: #{encode_sequence.1} parent=1 // pred_fallthru
      _
    // Predicated region
    $region14: #{encode_sequence.1} parent=1 // pred_check
      _
    $region15: #{encode_sequence.1} parent=1 // pred_check_branch
      %47 = sbr.rel (0) target = $region17
    $region16: #{encode_sequence.1} parent=1 // pred_region
      %s49 = ssub.s32 1024, 1024
      %50 = vsyncadd [#allocation8], %s49
      %s51 = sshll.u32 [#allocation9], 4
      %s52 = int_to_ptr.vmem [resolvable:$true] %s51
      %57 = dma.hbm_to_vmem [thread:$0]  %s4, 1024, %s52, [#allocation8], 128, 128, 8
    $region17: #{encode_sequence.1} parent=1 // pred_fallthru
      _
    // Predicated region
    $region18: #{encode_sequence.1} parent=1 // pred_check
      _
    $region19: #{encode_sequence.1} parent=1 // pred_check_branch
      %59 = sbr.rel (0) target = $region21
    $region20: #{encode_sequence.1} parent=1 // pred_region
      _
    $region21: #{encode_sequence.1} parent=1 // pred_fallthru
      _
    // Predicated region
    $region22: #{encode_sequence.1} parent=1 // pred_check
      _
    $region23: #{encode_sequence.1} parent=1 // pred_check_branch
      %61 = sbr.rel (0) target = $region25
    $region24: #{encode_sequence.1} parent=1 // pred_region
      _
    $region25: #{encode_sequence.1} parent=1 // pred_fallthru
      _
    // Predicated region
    $region26: #{encode_sequence.1} parent=1 // pred_check
      _
    $region27: #{encode_sequence.1} parent=1 // pred_check_branch
      %63 = sbr.rel (0) target = $region29
    $region28: #{encode_sequence.1} parent=1 // pred_region
      %64 = dma.done [#allocation5], 16
    $region29: #{encode_sequence.1} parent=1 // pred_fallthru
      _
    // Predicated region
    $region30: #{encode_sequence.1} parent=1 // pred_check
      _
    $region31: #{encode_sequence.1} parent=1 // pred_check_branch
      %66 = sbr.rel (0) target = $region33
    $region32: #{encode_sequence.1} parent=1 // pred_region
      %67 = dma.done [#allocation8], 1024
    $region33: #{encode_sequence.1} parent=1 // pred_fallthru
      _
    // Predicated region
    $region34: #{encode_sequence.1} parent=1 // pred_check
      _
    $region35: #{encode_sequence.1} parent=1 // pred_check_branch
      %69 = sbr.rel (0) target = $region37
    $region36: #{encode_sequence.1} parent=1 // pred_region
      %70 = dma.done [#allocation8], 1024
    $region37: #{encode_sequence.1} parent=1 // pred_fallthru
      _
    %s71 = sld [smem:[#allocation3]]
    %p72 = scmp.eq.s32.totalorder 0, 0
    // Predicated region
    $region38: #{encode_sequence.1} parent=1 // pred_check
      %p73 = pneg %p72
    $region39: #{encode_sequence.1} parent=1 // pred_check_branch
      %75 = sbr.rel (%p73) target = $region41
    $region40: #{encode_sequence.1} parent=1 // pred_region
      %v76 = vld [vmem:[%s2] sm:$0x1]
      %v77 = vld [vmem:[%s2 + $0x1] sm:$0x1]
      %vm78 = vcmask 253952
      %79 = vst.msk [vmem:[#allocation11] sm:$0x1] %vm78, %v76
      %80 = vst.msk [vmem:[#allocation11 + $0x1] sm:$0x1] %vm78, %v77
    $region41: #{encode_sequence.1} parent=1 // pred_fallthru
      _
    %v81 = vld [vmem:[#allocation4] sm:$0x1]
    %v82 = vld [vmem:[#allocation11] sm:$0x1]
    %v83 = vld [vmem:[#allocation7] sm:$0xff]
    %v84 = vld [vmem:[#allocation7 + $0x8] sm:$0xff]
    %v85 = vld [vmem:[#allocation7 + $0x10] sm:$0xff]
    %v86 = vld [vmem:[#allocation7 + $0x18] sm:$0xff]
    %v87 = vld [vmem:[%s5] sm:$0x1]
    %vm88 = vcmask 261120
    %v90 = vsel %vm88, %v81, 0
    %92 = vmatprep.subr.mxu0 0.0
    %93 = vmatpush1.msra.mxu0 0.0
    %94 = vmatprep.subr.mxu0 0.0
    %95 = vmatpush1.msra.mxu0 0.0
    %96 = vmatprep.subr.mxu0 0.0
    %97 = vmatpush1.msra.mxu0 0.0
    %98 = vmatprep.subr.mxu0 0.0
    %99 = vmatpush1.msra.mxu0 0.0
    %100 = vmatprep.subr.mxu0 0.0
    %101 = vmatpush1.msra.mxu0 0.0
    %102 = vmatprep.subr.mxu0 0.0
    %103 = vmatpush1.msra.mxu0 0.0
    %104 = vmatprep.subr.mxu0 0.0
    %105 = vmatpush1.msra.mxu0 0.0
    %106 = vmatprep.subr.mxu0 0.0
    %107 = vmatpush1.msra.mxu0 0.0
    %108 = vmatprep.subr.mxu0 0.0
    %109 = vmatpush1.msra.mxu0 0.0
    %110 = vmatprep.subr.mxu0 0.0
    %111 = vmatpush1.msra.mxu0 0.0
    %112 = vmatprep.subr.mxu0 0.0
    %113 = vmatpush1.msra.mxu0 0.0
    %114 = vmatprep.subr.mxu0 0.0
    %115 = vmatpush1.msra.mxu0 0.0
    %116 = vmatprep.subr.mxu0 0.0
    %117 = vmatpush1.msra.mxu0 %v86
    %118 = vmatprep.subr.mxu0 0.0
    %119 = vmatpush1.msra.mxu0 %v85
    %120 = vmatprep.subr.mxu0 0.0
    %121 = vmatpush1.msra.mxu0 %v84
    %122 = vmatprep.subr.mxu0 0.0
    %123 = vmatpush1.msra.mxu0 %v83
    %124 = vmatprep.subr.mxu0 0.0
    %125 = vmatpush2.msra.mxu0 0.0
    %126 = vmatprep.subr.mxu0 0.0
    %127 = vmatpush2.msra.mxu0 0.0
    %128 = vmatprep.subr.mxu0 0.0
    %129 = vmatpush2.msra.mxu0 0.0
    %130 = vmatprep.subr.mxu0 0.0
    %131 = vmatpush2.msra.mxu0 0.0
    %132 = vmatprep.subr.mxu0 0.0
    %133 = vmatpush2.msra.mxu0 0.0
    %134 = vmatprep.subr.mxu0 0.0
    %135 = vmatpush2.msra.mxu0 0.0
    %136 = vmatprep.subr.mxu0 0.0
    %137 = vmatpush2.msra.mxu0 0.0
    %138 = vmatprep.subr.mxu0 0.0
    %139 = vmatpush2.msra.mxu0 0.0
    %140 = vmatprep.subr.mxu0 0.0
    %141 = vmatpush2.msra.mxu0 0.0
    %142 = vmatprep.subr.mxu0 0.0
    %143 = vmatpush2.msra.mxu0 0.0
    %144 = vmatprep.subr.mxu0 0.0
    %145 = vmatpush2.msra.mxu0 0.0
    %146 = vmatprep.subr.mxu0 0.0
    %147 = vmatpush2.msra.mxu0 0.0
    %148 = vmatprep.subr.mxu0 0.0
    %149 = vmatpush2.msra.mxu0 0.0
    %150 = vmatprep.subr.mxu0 0.0
    %151 = vmatpush2.msra.mxu0 0.0
    %152 = vmatprep.subr.mxu0 0.0
    %153 = vmatpush2.msra.mxu0 0.0
    %154 = vmatprep.subr.mxu0 0.0
    %155 = vmatpush2.msra.mxu0 0.0
    %156 = vmatprep.mubr.f32.mxu0 0.0
    %157 = vmatmul.mubr.f32.gmra.mxu0 %v90
    %v158 = vpop.f32.mrf.mxu0
    %v159 = vadd.f32 %v87, %v158
    %v160 = vpop.f32.mrf.mxu0
    %161 = vdwg.mxu0
    %v162 = vld [vmem:[#allocation9] sm:$0xff]
    %v163 = vld [vmem:[#allocation9 + $0x8] sm:$0xff]
    %v164 = vld [vmem:[#allocation9 + $0x10] sm:$0xff]
    %v165 = vld [vmem:[#allocation9 + $0x18] sm:$0xff]
    %v166 = vld [vmem:[%s6] sm:$0x1]
    %v168 = vsel %vm88, %v82, 0
    %170 = vmatprep.subr.mxu0 0.0
    %171 = vmatpush1.msra.mxu0 0.0
    %172 = vmatprep.subr.mxu0 0.0
    %173 = vmatpush1.msra.mxu0 0.0
    %174 = vmatprep.subr.mxu0 0.0
    %175 = vmatpush1.msra.mxu0 0.0
    %176 = vmatprep.subr.mxu0 0.0
    %177 = vmatpush1.msra.mxu0 0.0
    %178 = vmatprep.subr.mxu0 0.0
    %179 = vmatpush1.msra.mxu0 0.0
    %180 = vmatprep.subr.mxu0 0.0
    %181 = vmatpush1.msra.mxu0 0.0
    %182 = vmatprep.subr.mxu0 0.0
    %183 = vmatpush1.msra.mxu0 0.0
    %184 = vmatprep.subr.mxu0 0.0
    %185 = vmatpush1.msra.mxu0 0.0
    %186 = vmatprep.subr.mxu0 0.0
    %187 = vmatpush1.msra.mxu0 0.0
    %188 = vmatprep.subr.mxu0 0.0
    %189 = vmatpush1.msra.mxu0 0.0
    %190 = vmatprep.subr.mxu0 0.0
    %191 = vmatpush1.msra.mxu0 0.0
    %192 = vmatprep.subr.mxu0 0.0
    %193 = vmatpush1.msra.mxu0 0.0
    %194 = vmatprep.subr.mxu0 0.0
    %195 = vmatpush1.msra.mxu0 %v165
    %196 = vmatprep.subr.mxu0 0.0
    %197 = vmatpush1.msra.mxu0 %v164
    %198 = vmatprep.subr.mxu0 0.0
    %199 = vmatpush1.msra.mxu0 %v163
    %200 = vmatprep.subr.mxu0 0.0
    %201 = vmatpush1.msra.mxu0 %v162
    %202 = vmatprep.subr.mxu0 0.0
    %203 = vmatpush2.msra.mxu0 0.0
    %204 = vmatprep.subr.mxu0 0.0
    %205 = vmatpush2.msra.mxu0 0.0
    %206 = vmatprep.subr.mxu0 0.0
    %207 = vmatpush2.msra.mxu0 0.0
    %208 = vmatprep.subr.mxu0 0.0
    %209 = vmatpush2.msra.mxu0 0.0
    %210 = vmatprep.subr.mxu0 0.0
    %211 = vmatpush2.msra.mxu0 0.0
    %212 = vmatprep.subr.mxu0 0.0
    %213 = vmatpush2.msra.mxu0 0.0
    %214 = vmatprep.subr.mxu0 0.0
    %215 = vmatpush2.msra.mxu0 0.0
    %216 = vmatprep.subr.mxu0 0.0
    %217 = vmatpush2.msra.mxu0 0.0
    %218 = vmatprep.subr.mxu0 0.0
    %219 = vmatpush2.msra.mxu0 0.0
    %220 = vmatprep.subr.mxu0 0.0
    %221 = vmatpush2.msra.mxu0 0.0
    %222 = vmatprep.subr.mxu0 0.0
    %223 = vmatpush2.msra.mxu0 0.0
    %224 = vmatprep.subr.mxu0 0.0
    %225 = vmatpush2.msra.mxu0 0.0
    %226 = vmatprep.subr.mxu0 0.0
    %227 = vmatpush2.msra.mxu0 0.0
    %228 = vmatprep.subr.mxu0 0.0
    %229 = vmatpush2.msra.mxu0 0.0
    %230 = vmatprep.subr.mxu0 0.0
    %231 = vmatpush2.msra.mxu0 0.0
    %232 = vmatprep.subr.mxu0 0.0
    %233 = vmatpush2.msra.mxu0 0.0
    %234 = vmatprep.mubr.f32.mxu0 0.0
    %235 = vmatmul.mubr.f32.gmra.mxu0 %v168
    %v236 = vpop.f32.mrf.mxu0
    %v237 = vadd.f32 %v166, %v236
    %v238 = vpop.f32.mrf.mxu0
    %239 = vdwg.mxu0
    %v240 = vadd.f32 %v159, %v237
    %v241 = vxor.u32 %v240, 2147483648
    %v242 = vmul.f32 %v241, 1.442695
    %v243 = vpow.pop %v242
    %v244 = vadd.f32 %v243, 1.0
    %v245 = vrcp.pop %v244
    %v246 = vmul.f32 1.0, %v245
    %248 = vrot.lane.b32.xlu0 %v237, 64
    %v249 = vpop.permute.xlu0 %248
    %v251 = vmul.f32 %v246, %v249
    %253 = vrot.lane.b32.xlu0 %v251, 64
    %v254 = vpop.permute.xlu0 %253
    %v256 = vadd.f32 %v159, %v254
    %v257 = vtanh.pop %v256
    %v258 = vsub.f32 1.0, %v246
    %260 = vrot.lane.b32.xlu0 %v257, 96
    %v261 = vpop.permute.xlu0 %260
    %v263 = vmul.f32 %v258, %v261
    %v264 = vlaneseq
    %v265 = vshrl.u32 %v264, 7
    %v266 = vsub.s32 0, %v265
    %v267 = vrot.slane %v82, %v266
    %268 = vrot.lane.b32.xlu0 %v267, 32
    %v269 = vpop.permute.xlu0 %268
    %v271 = vmul.f32 %v246, %v269
    %v272 = vadd.f32 %v263, %v271
    %274 = vrot.lane.b32.xlu0 %v272, 96
    %v275 = vpop.permute.xlu0 %274
    %vm277 = vcmask 253952
    %278 = vst.msk [vmem:[#allocation11] sm:$0x1] %vm277, %v275
    %s279 = scalar_lea.vmem [#allocation11], 1
    %v280 = vld [vmem:[%s279] sm:$0x1]
    %s281 = scalar_lea.vmem [#allocation7], 32
    %v282 = vld [vmem:[%s281] sm:$0xff]
    %v283 = vld [vmem:[%s281 + $0x8] sm:$0xff]
    %v284 = vld [vmem:[%s281 + $0x10] sm:$0xff]
    %v285 = vld [vmem:[%s281 + $0x18] sm:$0xff]
    %s286 = scalar_lea.vmem %s5, 1
    %v287 = vld [vmem:[%s286] sm:$0x1]
    %v288 = vsel %vm88, %v275, 0
    %290 = vmatprep.subr.mxu0 0.0
    %291 = vmatpush1.msra.mxu0 0.0
    %292 = vmatprep.subr.mxu0 0.0
    %293 = vmatpush1.msra.mxu0 0.0
    %294 = vmatprep.subr.mxu0 0.0
    %295 = vmatpush1.msra.mxu0 0.0
    %296 = vmatprep.subr.mxu0 0.0
    %297 = vmatpush1.msra.mxu0 0.0
    %298 = vmatprep.subr.mxu0 0.0
    %299 = vmatpush1.msra.mxu0 0.0
    %300 = vmatprep.subr.mxu0 0.0
    %301 = vmatpush1.msra.mxu0 0.0
    %302 = vmatprep.subr.mxu0 0.0
    %303 = vmatpush1.msra.mxu0 0.0
    %304 = vmatprep.subr.mxu0 0.0
    %305 = vmatpush1.msra.mxu0 0.0
    %306 = vmatprep.subr.mxu0 0.0
    %307 = vmatpush1.msra.mxu0 0.0
    %308 = vmatprep.subr.mxu0 0.0
    %309 = vmatpush1.msra.mxu0 0.0
    %310 = vmatprep.subr.mxu0 0.0
    %311 = vmatpush1.msra.mxu0 0.0
    %312 = vmatprep.subr.mxu0 0.0
    %313 = vmatpush1.msra.mxu0 0.0
    %314 = vmatprep.subr.mxu0 0.0
    %315 = vmatpush1.msra.mxu0 %v285
    %316 = vmatprep.subr.mxu0 0.0
    %317 = vmatpush1.msra.mxu0 %v284
    %318 = vmatprep.subr.mxu0 0.0
    %319 = vmatpush1.msra.mxu0 %v283
    %320 = vmatprep.subr.mxu0 0.0
    %321 = vmatpush1.msra.mxu0 %v282
    %322 = vmatprep.subr.mxu0 0.0
    %323 = vmatpush2.msra.mxu0 0.0
    %324 = vmatprep.subr.mxu0 0.0
    %325 = vmatpush2.msra.mxu0 0.0
    %326 = vmatprep.subr.mxu0 0.0
    %327 = vmatpush2.msra.mxu0 0.0
    %328 = vmatprep.subr.mxu0 0.0
    %329 = vmatpush2.msra.mxu0 0.0
    %330 = vmatprep.subr.mxu0 0.0
    %331 = vmatpush2.msra.mxu0 0.0
    %332 = vmatprep.subr.mxu0 0.0
    %333 = vmatpush2.msra.mxu0 0.0
    %334 = vmatprep.subr.mxu0 0.0
    %335 = vmatpush2.msra.mxu0 0.0
    %336 = vmatprep.subr.mxu0 0.0
    %337 = vmatpush2.msra.mxu0 0.0
    %338 = vmatprep.subr.mxu0 0.0
    %339 = vmatpush2.msra.mxu0 0.0
    %340 = vmatprep.subr.mxu0 0.0
    %341 = vmatpush2.msra.mxu0 0.0
    %342 = vmatprep.subr.mxu0 0.0
    %343 = vmatpush2.msra.mxu0 0.0
    %344 = vmatprep.subr.mxu0 0.0
    %345 = vmatpush2.msra.mxu0 0.0
    %346 = vmatprep.subr.mxu0 0.0
    %347 = vmatpush2.msra.mxu0 0.0
    %348 = vmatprep.subr.mxu0 0.0
    %349 = vmatpush2.msra.mxu0 0.0
    %350 = vmatprep.subr.mxu0 0.0
    %351 = vmatpush2.msra.mxu0 0.0
    %352 = vmatprep.subr.mxu0 0.0
    %353 = vmatpush2.msra.mxu0 0.0
    %354 = vmatprep.mubr.f32.mxu0 0.0
    %355 = vmatmul.mubr.f32.gmra.mxu0 %v288
    %v356 = vpop.f32.mrf.mxu0
    %v357 = vadd.f32 %v287, %v356
    %v358 = vpop.f32.mrf.mxu0
    %359 = vdwg.mxu0
    %s360 = scalar_lea.vmem [#allocation9], 32
    %v361 = vld [vmem:[%s360] sm:$0xff]
    %v362 = vld [vmem:[%s360 + $0x8] sm:$0xff]
    %v363 = vld [vmem:[%s360 + $0x10] sm:$0xff]
    %v364 = vld [vmem:[%s360 + $0x18] sm:$0xff]
    %s365 = scalar_lea.vmem %s6, 1
    %v366 = vld [vmem:[%s365] sm:$0x1]
    %v368 = vsel %vm88, %v280, 0
    %370 = vmatprep.subr.mxu0 0.0
    %371 = vmatpush1.msra.mxu0 0.0
    %372 = vmatprep.subr.mxu0 0.0
    %373 = vmatpush1.msra.mxu0 0.0
    %374 = vmatprep.subr.mxu0 0.0
    %375 = vmatpush1.msra.mxu0 0.0
    %376 = vmatprep.subr.mxu0 0.0
    %377 = vmatpush1.msra.mxu0 0.0
    %378 = vmatprep.subr.mxu0 0.0
    %379 = vmatpush1.msra.mxu0 0.0
    %380 = vmatprep.subr.mxu0 0.0
    %381 = vmatpush1.msra.mxu0 0.0
    %382 = vmatprep.subr.mxu0 0.0
    %383 = vmatpush1.msra.mxu0 0.0
    %384 = vmatprep.subr.mxu0 0.0
    %385 = vmatpush1.msra.mxu0 0.0
    %386 = vmatprep.subr.mxu0 0.0
    %387 = vmatpush1.msra.mxu0 0.0
    %388 = vmatprep.subr.mxu0 0.0
    %389 = vmatpush1.msra.mxu0 0.0
    %390 = vmatprep.subr.mxu0 0.0
    %391 = vmatpush1.msra.mxu0 0.0
    %392 = vmatprep.subr.mxu0 0.0
    %393 = vmatpush1.msra.mxu0 0.0
    %394 = vmatprep.subr.mxu0 0.0
    %395 = vmatpush1.msra.mxu0 %v364
    %396 = vmatprep.subr.mxu0 0.0
    %397 = vmatpush1.msra.mxu0 %v363
    %398 = vmatprep.subr.mxu0 0.0
    %399 = vmatpush1.msra.mxu0 %v362
    %400 = vmatprep.subr.mxu0 0.0
    %401 = vmatpush1.msra.mxu0 %v361
    %402 = vmatprep.subr.mxu0 0.0
    %403 = vmatpush2.msra.mxu0 0.0
    %404 = vmatprep.subr.mxu0 0.0
    %405 = vmatpush2.msra.mxu0 0.0
    %406 = vmatprep.subr.mxu0 0.0
    %407 = vmatpush2.msra.mxu0 0.0
    %408 = vmatprep.subr.mxu0 0.0
    %409 = vmatpush2.msra.mxu0 0.0
    %410 = vmatprep.subr.mxu0 0.0
    %411 = vmatpush2.msra.mxu0 0.0
    %412 = vmatprep.subr.mxu0 0.0
    %413 = vmatpush2.msra.mxu0 0.0
    %414 = vmatprep.subr.mxu0 0.0
    %415 = vmatpush2.msra.mxu0 0.0
    %416 = vmatprep.subr.mxu0 0.0
    %417 = vmatpush2.msra.mxu0 0.0
    %418 = vmatprep.subr.mxu0 0.0
    %419 = vmatpush2.msra.mxu0 0.0
    %420 = vmatprep.subr.mxu0 0.0
    %421 = vmatpush2.msra.mxu0 0.0
    %422 = vmatprep.subr.mxu0 0.0
    %423 = vmatpush2.msra.mxu0 0.0
    %424 = vmatprep.subr.mxu0 0.0
    %425 = vmatpush2.msra.mxu0 0.0
    %426 = vmatprep.subr.mxu0 0.0
    %427 = vmatpush2.msra.mxu0 0.0
    %428 = vmatprep.subr.mxu0 0.0
    %429 = vmatpush2.msra.mxu0 0.0
    %430 = vmatprep.subr.mxu0 0.0
    %431 = vmatpush2.msra.mxu0 0.0
    %432 = vmatprep.subr.mxu0 0.0
    %433 = vmatpush2.msra.mxu0 0.0
    %434 = vmatprep.mubr.f32.mxu0 0.0
    %435 = vmatmul.mubr.f32.gmra.mxu0 %v368
    %v436 = vpop.f32.mrf.mxu0
    %v437 = vadd.f32 %v366, %v436
    %v438 = vpop.f32.mrf.mxu0
    %439 = vdwg.mxu0
    %v440 = vadd.f32 %v357, %v437
    %v441 = vxor.u32 %v440, 2147483648
    %v442 = vmul.f32 %v441, 1.442695
    %v443 = vpow.pop %v442
    %v444 = vadd.f32 %v443, 1.0
    %v445 = vrcp.pop %v444
    %v446 = vmul.f32 1.0, %v445
    %448 = vrot.lane.b32.xlu0 %v437, 64
    %v449 = vpop.permute.xlu0 %448
    %v451 = vmul.f32 %v446, %v449
    %453 = vrot.lane.b32.xlu0 %v451, 64
    %v454 = vpop.permute.xlu0 %453
    %v456 = vadd.f32 %v357, %v454
    %v457 = vtanh.pop %v456
    %v458 = vsub.f32 1.0, %v446
    %460 = vrot.lane.b32.xlu0 %v457, 96
    %v461 = vpop.permute.xlu0 %460
    %v463 = vmul.f32 %v458, %v461
    %v464 = vlaneseq
    %v465 = vshrl.u32 %v464, 7
    %v466 = vsub.s32 0, %v465
    %v467 = vrot.slane %v280, %v466
    %468 = vrot.lane.b32.xlu0 %v467, 32
    %v469 = vpop.permute.xlu0 %468
    %v471 = vmul.f32 %v446, %v469
    %v472 = vadd.f32 %v463, %v471
    %474 = vrot.lane.b32.xlu0 %v472, 96
    %v475 = vpop.permute.xlu0 %474
    %477 = vst.msk [vmem:[%s279] sm:$0x1] %vm277, %v475
    %478 = vst.msk [vmem:[#allocation10] sm:$0x1] %vm277, %v475
    // Predicated region
    $region42: #{encode_sequence.1} parent=1 // pred_check
      _
    $region43: #{encode_sequence.1} parent=1 // pred_check_branch
      %480 = sbr.rel (0) target = $region45
    $region44: #{encode_sequence.1} parent=1 // pred_region
      %s482 = ssub.s32 16, 16
      %483 = vsyncadd [#allocation6], %s482
      %s485 = sshll.u32 [#allocation10], 4
      %s486 = int_to_ptr.vmem [resolvable:$true] %s485
      %488 = dma.vmem_to_hbm [thread:$0]  %s486, 16, %s7, [#allocation6]
    $region45: #{encode_sequence.1} parent=1 // pred_fallthru
      _
    // Predicated region
    $region46: #{encode_sequence.1} parent=1 // pred_check
      _
    $region47: #{encode_sequence.1} parent=1 // pred_check_branch
      %490 = sbr.rel (0) target = $region49
    $region48: #{encode_sequence.1} parent=1 // pred_region
      %s492 = ssub.s32 32, 32
      %493 = vsyncadd [#allocation12], %s492
      %s494 = sshll.u32 [#allocation11], 4
      %s495 = int_to_ptr.vmem [resolvable:$true] %s494
      %500 = dma.vmem_to_hbm [thread:$0]  %s495, 32, %s8, [#allocation12], 16, 16, 1
    $region49: #{encode_sequence.1} parent=1 // pred_fallthru
      _
    // Predicated region
    $region50: #{encode_sequence.1} parent=1 // pred_check
      _
    $region51: #{encode_sequence.1} parent=1 // pred_check_branch
      %502 = sbr.rel (0) target = $region53
    $region52: #{encode_sequence.1} parent=1 // pred_region
      %503 = dma.done [#allocation6], 16
    $region53: #{encode_sequence.1} parent=1 // pred_fallthru
      _
    // Predicated region
    $region54: #{encode_sequence.1} parent=1 // pred_check
      _
    $region55: #{encode_sequence.1} parent=1 // pred_check_branch
      %505 = sbr.rel (0) target = $region57
    $region56: #{encode_sequence.1} parent=1 // pred_region
      %506 = dma.done [#allocation12], 32
    $region57: #{encode_sequence.1} parent=1 // pred_fallthru
      _
    %507 = vsyncpa [#allocation5], 1
    %508 = vsyncpa [#allocation8], 1
    %509 = vsyncpa [#allocation6], 1
    %510 = vsyncpa [#allocation12], 1

</llo_original>
